<compile_context>
chip_gen: v6e
topology: v6e:2x2x1
jax: 0.10.0
libtpu: 0.0.40
codegen_flags: <defaults>
</compile_context>

<pallas_src>
import functools
import math

import jax
import jax.numpy as jnp
from jax.experimental import pallas as pl
from jax.experimental.pallas import tpu as pltpu


# ----------------------------- configuration -------------------------------
class Cfg:
    z_dim = 32
    pose_predict_num_candidates = 4
    pose_candidates_num_layers = 3
    pose_predictor_student = True
    predict_translation = True
    predict_translation_tanh = True
    predict_translation_init_stddev = 0.1   # unused by forward; kept for parity
    predict_translation_scaling_factor = 0.1


F_DIM = 32           # PoseBranch hidden width (hard-coded in the PyTorch module)
LRELU_SLOPE = 0.01   # nn.LeakyReLU default negative_slope
OUT_PAD = 128        # lane-dense output slab width (multiple of 128)
DEFAULT_TILE_B = 256 # batch tile (multiple of 128 -> OK on v5e/v6e/v7x)


def _round_up(n, m):
    return ((n + m - 1) // m) * m


def _bf16_round(a):
    """Round f32 values onto the bf16 grid (so bf16 weight storage is exact)."""
    return a.astype(jnp.bfloat16).astype(jnp.float32)


def _leaky(h):
    # max(h, slope*h) == LeakyReLU(h) exactly for slope in (0, 1).
    return jnp.maximum(h, LRELU_SLOPE * h)


# ----------------------------- parameter init ------------------------------
def xavier_uniform(key, in_dim, out_dim, dtype=jnp.float32):
    """torch.nn.init.xavier_uniform_ equivalent; stored as (in, out)."""
    bound = math.sqrt(6.0 / (in_dim + out_dim))
    return jax.random.uniform(key, (in_dim, out_dim), dtype, -bound, bound)


def make_branch_params(key, z_dim, num_layers):
    """One PoseBranch: num_layers Linear layers, LeakyReLU between, last -> 4."""
    ws, bs = [], []
    for k in range(num_layers):
        inp_dim = z_dim if k == 0 else F_DIM
        out_dim = 4 if k == num_layers - 1 else F_DIM
        key, sub = jax.random.split(key)
        ws.append(_bf16_round(xavier_uniform(sub, inp_dim, out_dim)))
        bs.append(jnp.full((1, out_dim), 0.01, jnp.float32))
    return ws, bs


# ------------------------------- kernels ------------------------------------
def _fused_kernel(x_ref, w1_ref, b1_ref, w2_ref, b2_ref, w3_ref, b3_ref, o_ref,
                  *, use_tanh, scale, has_trans, hdim):
    """All branches (wide/block-diag MLP) + fused translation head per tile."""
    x = x_ref[...]                                                  # (TB, Z) f32
    # Layer 1 (+ translation head fused into the extra 128 lanes of W1).
    r1 = jnp.dot(x, w1_ref[...].astype(jnp.float32),
                 preferred_element_type=jnp.float32) + b1_ref[...]  # (TB, hdim[+128])
    h = _leaky(r1[:, :hdim])                                        # (TB, hdim)
    # Layer 2 (block-diagonal, MXU-tile aligned).
    h = jnp.dot(h, w2_ref[...].astype(jnp.float32),
                preferred_element_type=jnp.float32) + b2_ref[...]
    h = _leaky(h)
    # Layer 3 -> lane-dense (TB, 128) output slab.
    o = jnp.dot(h, w3_ref[...].astype(jnp.float32),
                preferred_element_type=jnp.float32) + b3_ref[...]
    if has_trans:
        t = r1[:, hdim:hdim + OUT_PAD]
        if use_tanh:
            t = jnp.tanh(t) * scale
        o = o + t      # translation weights/biases live only in their own lanes
    o_ref[...] = o


def _single_kernel(x_ref, w_ref, b_ref, o_ref, *, use_tanh, scale, has_trans):
    """Single-candidate path: Linear(z,4) + translation head, one matmul."""
    x = x_ref[...]
    r = jnp.dot(x, w_ref[...].astype(jnp.float32),
                preferred_element_type=jnp.float32) + b_ref[...]
    o = r[:, :OUT_PAD]
    if has_trans:
        t = r[:, OUT_PAD:OUT_PAD * 2]
        if use_tanh:
            t = jnp.tanh(t) * scale
        o = o + t
    o_ref[...] = o


# ------------------------------ wrappers -------------------------------------
def _choose_tile(B):
    if B >= DEFAULT_TILE_B:
        return DEFAULT_TILE_B
    return _round_up(max(B, 8), 8)


def _pad_rows(x, Bp):
    B = x.shape[0]
    if Bp == B:
        return x
    return jnp.concatenate([x, jnp.zeros((Bp - B, x.shape[1]), x.dtype)], axis=0)


def run_fused(x, packed, meta, *, use_tanh, scale, has_trans, tile_b=None):
    B, Z = x.shape
    hdim = meta["hdim"]
    tile_b = _choose_tile(B) if tile_b is None else tile_b
    Bp = _round_up(B, tile_b)
    x = _pad_rows(x, Bp)

    w1, b1 = packed["w1"], packed["b1"]
    w2, b2 = packed["w2"], packed["b2"]
    w3, b3 = packed["w3"], packed["b3"]
    weight_args = (w1, b1, w2, b2, w3, b3)

    kernel = functools.partial(_fused_kernel, use_tanh=use_tanh, scale=scale,
                               has_trans=has_trans, hdim=hdim)

    # Weights/biases: index_map pinned to (0,0) -> DMA'd once, VMEM-resident.
    pinned = [pl.BlockSpec(a.shape, lambda i: (0, 0)) for a in weight_args]

    flops = 2 * Bp * (Z * w1.shape[1] + hdim * hdim + hdim * OUT_PAD)
    trans_ops = Bp * OUT_PAD if (has_trans and use_tanh) else 0
    bytes_accessed = (Bp * Z * 4 + Bp * OUT_PAD * 4
                      + sum(int(a.size) * a.dtype.itemsize for a in weight_args))

    slab = pl.pallas_call(
        kernel,
        out_shape=jax.ShapeDtypeStruct((Bp, OUT_PAD), jnp.float32),
        grid_spec=pltpu.PrefetchScalarGridSpec(
            num_scalar_prefetch=0,
            grid=(Bp // tile_b,),
            in_specs=[pl.BlockSpec((tile_b, Z), lambda i: (i, 0))] + pinned,
            out_specs=pl.BlockSpec((tile_b, OUT_PAD), lambda i: (i, 0)),
        ),
        compiler_params=pltpu.CompilerParams(
            dimension_semantics=("parallel",)),
        cost_estimate=pl.CostEstimate(flops=flops, transcendentals=trans_ops,
                                      bytes_accessed=bytes_accessed),
    )(x, w1, b1, w2, b2, w3, b3)
    return slab[:B]


def run_single(x, packed, meta, *, use_tanh, scale, has_trans, tile_b=None):
    B, Z = x.shape
    tile_b = _choose_tile(B) if tile_b is None else tile_b
    Bp = _round_up(B, tile_b)
    x = _pad_rows(x, Bp)

    w, b = packed["w"], packed["b"]
    kernel = functools.partial(_single_kernel, use_tanh=use_tanh, scale=scale,
                               has_trans=has_trans)
    pinned = [pl.BlockSpec(a.shape, lambda i: (0, 0)) for a in (w, b)]

    flops = 2 * Bp * Z * w.shape[1]
    trans_ops = Bp * OUT_PAD if (has_trans and use_tanh) else 0
    bytes_accessed = (Bp * Z * 4 + Bp * OUT_PAD * 4
                      + sum(int(a.size) * a.dtype.itemsize for a in (w, b)))

    slab = pl.pallas_call(
        kernel,
        out_shape=jax.ShapeDtypeStruct((Bp, OUT_PAD), jnp.float32),
        grid_spec=pltpu.PrefetchScalarGridSpec(
            num_scalar_prefetch=0,
            grid=(Bp // tile_b,),
            in_specs=[pl.BlockSpec((tile_b, Z), lambda i: (i, 0))] + pinned,
            out_specs=pl.BlockSpec((tile_b, OUT_PAD), lambda i: (i, 0)),
        ),
        compiler_params=pltpu.CompilerParams(
            dimension_semantics=("parallel",)),
        cost_estimate=pl.CostEstimate(flops=flops, transcendentals=trans_ops,
                                      bytes_accessed=bytes_accessed),
    )(x, w, b)
    return slab[:B]


def pose_net_forward(cfg, params, inputs):
    """Mirror of PoseNet.forward (one fused Pallas launch, batch-gridded)."""
    out = {}
    nc = cfg.pose_predict_num_candidates
    has_trans = cfg.predict_translation
    use_tanh = cfg.predict_translation_tanh
    scale = cfg.predict_translation_scaling_factor
    packed, meta = params["packed"], params["meta"]

    if nc > 1:
        slab = run_fused(inputs, packed, meta, use_tanh=use_tanh, scale=scale,
                         has_trans=has_trans)
        # torch.cat(outs, dim=1).reshape(-1, 4): row index = b * NC + c, which
        # is exactly the natural reshape of the branch-major slab columns.
        out["poses"] = slab[:, :nc * 4].reshape(-1, 4)
        if cfg.pose_predictor_student:
            out["pose_student"] = slab[:, nc * 4:nc * 4 + 4]
    else:
        slab = run_single(inputs, packed, meta, use_tanh=use_tanh, scale=scale,
                          has_trans=has_trans)
        out["poses"] = slab[:, :4]

    t_off = meta["t_off"]
    out["predicted_translation"] = (slab[:, t_off:t_off + 3] if has_trans else None)
    return out


# --------------------------- parameter packing --------------------------------
def build_params(cfg, key):
    Z = cfg.z_dim
    nc = cfg.pose_predict_num_candidates
    nl = cfg.pose_candidates_num_layers
    has_trans = cfg.predict_translation

    raw = {}
    if has_trans:
        key, sub = jax.random.split(key)
        wt = _bf16_round(xavier_uniform(sub, Z, 3))
        bt = jnp.full((1, 3), 0.01, jnp.float32)
        raw["trans"] = (wt, bt)

    if nc > 1:
        # TODO(synk): packing below assumes the default 3-layer PoseBranch.
        assert nl == 3, "packing implements the 3-layer PoseBranch configuration"
        nb = nc + (1 if cfg.pose_predictor_student else 0)
        t_off = nb * 4
        assert t_off + 3 <= OUT_PAD
        H = max(256, _round_up(nb * F_DIM, 128))   # MXU-aligned hidden width

        w1 = jnp.zeros((Z, H), jnp.float32)
        b1 = jnp.zeros((1, H), jnp.float32)
        w2 = jnp.zeros((H, H), jnp.float32)
        b2 = jnp.zeros((1, H), jnp.float32)
        w3 = jnp.zeros((H, OUT_PAD), jnp.float32)
        b3 = jnp.zeros((1, OUT_PAD), jnp.float32)
        branches = []
        for c in range(nb):
            key, sub = jax.random.split(key)
            ws, bs = make_branch_params(sub, Z, nl)
            branches.append((ws, bs))
            f0, o0 = c * F_DIM, c * 4
            w1 = w1.at[:, f0:f0 + F_DIM].set(ws[0])
            b1 = b1.at[:, f0:f0 + F_DIM].set(bs[0])
            w2 = w2.at[f0:f0 + F_DIM, f0:f0 + F_DIM].set(ws[1])
            b2 = b2.at[:, f0:f0 + F_DIM].set(bs[1])
            w3 = w3.at[f0:f0 + F_DIM, o0:o0 + 4].set(ws[2])
            b3 = b3.at[:, o0:o0 + 4].set(bs[2])
        raw["branches"] = branches

        if has_trans:
            wt, bt = raw["trans"]
            wt_slab = jnp.zeros((Z, OUT_PAD), jnp.float32).at[:, t_off:t_off + 3].set(wt)
            bt_slab = jnp.zeros((1, OUT_PAD), jnp.float32).at[:, t_off:t_off + 3].set(bt)
            # Translation-fusion invariants: trans slab is zero in the pose
            # lanes and w3/b3 are zero in the trans lanes (tanh(0)=0 keeps the
            # fused add exact).  A future init change must not break these.
            assert bool(jnp.all(wt_slab[:, :t_off] == 0))
            assert bool(jnp.all(wt_slab[:, t_off + 3:] == 0))
            assert bool(jnp.all(bt_slab[:, :t_off] == 0))
            assert bool(jnp.all(bt_slab[:, t_off + 3:] == 0))
            assert bool(jnp.all(w3[:, t_off:t_off + 3] == 0))
            assert bool(jnp.all(b3[:, t_off:t_off + 3] == 0))
            w1 = jnp.concatenate([w1, wt_slab], axis=1)        # (Z, H + 128)
            b1 = jnp.concatenate([b1, bt_slab], axis=1)

        packed = {
            "w1": w1.astype(jnp.bfloat16), "b1": b1,
            "w2": w2.astype(jnp.bfloat16), "b2": b2,
            "w3": w3.astype(jnp.bfloat16), "b3": b3,
        }
        meta = {"hdim": H, "t_off": t_off, "nb": nb}
    else:
        key, sub = jax.random.split(key)
        wq = _bf16_round(xavier_uniform(sub, Z, 4))
        bq = jnp.full((1, 4), 0.01, jnp.float32)
        raw["single"] = (wq, bq)
        t_off = 4
        wq_slab = jnp.zeros((Z, OUT_PAD), jnp.float32).at[:, :4].set(wq)
        bq_slab = jnp.zeros((1, OUT_PAD), jnp.float32).at[:, :4].set(bq)
        if has_trans:
            wt, bt = raw["trans"]
            wt_slab = jnp.zeros((Z, OUT_PAD), jnp.float32).at[:, t_off:t_off + 3].set(wt)
            bt_slab = jnp.zeros((1, OUT_PAD), jnp.float32).at[:, t_off:t_off + 3].set(bt)
            assert bool(jnp.all(wq_slab[:, t_off:t_off + 3] == 0))
            assert bool(jnp.all(bq_slab[:, t_off:t_off + 3] == 0))
            assert bool(jnp.all(wt_slab[:, :t_off] == 0))
            assert bool(jnp.all(wt_slab[:, t_off + 3:] == 0))
            w = jnp.concatenate([wq_slab, wt_slab], axis=1)    # (Z, 256)
            b = jnp.concatenate([bq_slab, bt_slab], axis=1)
        else:
            w, b = wq_slab, bq_slab
        packed = {"w": w.astype(jnp.bfloat16), "b": b}
        meta = {"t_off": t_off}

    return {"raw": raw, "packed": packed, "meta": meta}


# ----------------------------- pure-JAX reference ------------------------------
def _branch_ref(ws, bs, x):
    h = x
    for k in range(len(ws)):
        h = h @ ws[k] + bs[k]
        if k < len(ws) - 1:
            h = _leaky(h)
    return h


def reference_forward(cfg, params, x):
    """Per-branch reference from the RAW (unpacked) weights -> verifies packing."""
    raw = params["raw"]
    out = {}
    nc = cfg.pose_predict_num_candidates
    if nc > 1:
        outs = [_branch_ref(ws, bs, x) for ws, bs in raw["branches"][:nc]]
        out["poses"] = jnp.concatenate(outs, axis=1).reshape(-1, 4)
        if cfg.pose_predictor_student:
            ws, bs = raw["branches"][nc]
            out["pose_student"] = _branch_ref(ws, bs, x)
    else:
        wq, bq = raw["single"]
        out["poses"] = x @ wq + bq
    if cfg.predict_translation:
        wt, bt = raw["trans"]
        t = x @ wt + bt
        if cfg.predict_translation_tanh:
            t = jnp.tanh(t) * cfg.predict_translation_scaling_factor
        out["predicted_translation"] = t
    else:
        out["predicted_translation"] = None
    return out


def _check(name, got, want, atol=1e-4, rtol=1e-4):
    err = float(jnp.max(jnp.abs(got - want)))
    assert bool(jnp.allclose(got, want, atol=atol, rtol=rtol)), \
        f"{name} mismatch: max|diff|={err}"


# --------------------------------- main --------------------------------------
if __name__ == "__main__":
    cfg = Cfg()
    key = jax.random.PRNGKey(0)
    key, pkey, xkey, x2key = jax.random.split(key, 4)

    # ---- multi-candidate config (default), small batch ----
    params = build_params(cfg, pkey)
    B = 8
    inputs = jax.random.normal(xkey, (B, cfg.z_dim), jnp.float32)

    out = pose_net_forward(cfg, params, inputs)
    jax.block_until_ready(out)

    assert out["poses"].shape == (B * cfg.pose_predict_num_candidates, 4)
    assert out["pose_student"].shape == (B, 4)
    assert out["predicted_translation"].shape == (B, 3)

    ref = reference_forward(cfg, params, inputs)
    _check("poses", out["poses"], ref["poses"])
    _check("pose_student", out["pose_student"], ref["pose_student"])
    _check("predicted_translation", out["predicted_translation"],
           ref["predicted_translation"])

    # ---- multi-candidate config, larger batch to exercise the batch grid ----
    B2 = 320   # pads to 512 -> 2 grid steps of TILE_B=256
    inputs2 = jax.random.normal(x2key, (B2, cfg.z_dim), jnp.float32)
    out2 = pose_net_forward(cfg, params, inputs2)
    jax.block_until_ready(out2)
    ref2 = reference_forward(cfg, params, inputs2)
    _check("poses(B=320)", out2["poses"], ref2["poses"])
    _check("pose_student(B=320)", out2["pose_student"], ref2["pose_student"])
    _check("predicted_translation(B=320)", out2["predicted_translation"],
           ref2["predicted_translation"])

    # ---- single-candidate config ----
    cfg1 = Cfg()
    cfg1.pose_predict_num_candidates = 1
    params1 = build_params(cfg1, pkey)
    out1 = pose_net_forward(cfg1, params1, inputs)
    jax.block_until_ready(out1)
    assert out1["poses"].shape == (B, 4)
    assert out1["predicted_translation"].shape == (B, 3)
    ref1 = reference_forward(cfg1, params1, inputs)
    _check("poses(nc=1)", out1["poses"], ref1["poses"])
    _check("predicted_translation(nc=1)", out1["predicted_translation"],
           ref1["predicted_translation"])

    print("KERNEL_OK")
</pallas_src>

<mosaic_0001>
module attributes {stable_mosaic.version = 11 : i64} {
  func.func @_fused_kernel(%arg0: i32, %arg1: memref<8x32xf32, #tpu.memory_space<vmem>>, %arg2: memref<32x384xbf16, #tpu.memory_space<vmem>>, %arg3: memref<1x384xf32, #tpu.memory_space<vmem>>, %arg4: memref<256x256xbf16, #tpu.memory_space<vmem>>, %arg5: memref<1x256xf32, #tpu.memory_space<vmem>>, %arg6: memref<256x128xbf16, #tpu.memory_space<vmem>>, %arg7: memref<1x128xf32, #tpu.memory_space<vmem>>, %arg8: memref<8x128xf32, #tpu.memory_space<vmem>>) attributes {dimension_semantics = [#tpu.dimension_semantics<parallel>], iteration_bounds = array<i64: 1>, scalar_prefetch = 0 : i64, scratch_operands = 0 : i64, tpu.core_type = #tpu.core_type<tc>, window_params = [{transform_indices = @transform_0, window_bounds = array<i64: 8, 32>}, {pipeline_mode = #tpu.pipeline_mode<synchronous>, transform_indices = @transform_1, window_bounds = array<i64: 32, 384>}, {pipeline_mode = #tpu.pipeline_mode<synchronous>, transform_indices = @transform_2, window_bounds = array<i64: 1, 384>}, {pipeline_mode = #tpu.pipeline_mode<synchronous>, transform_indices = @transform_3, window_bounds = array<i64: 256, 256>}, {pipeline_mode = #tpu.pipeline_mode<synchronous>, transform_indices = @transform_4, window_bounds = array<i64: 1, 256>}, {pipeline_mode = #tpu.pipeline_mode<synchronous>, transform_indices = @transform_5, window_bounds = array<i64: 256, 128>}, {pipeline_mode = #tpu.pipeline_mode<synchronous>, transform_indices = @transform_6, window_bounds = array<i64: 1, 128>}, {transform_indices = @transform_7, window_bounds = array<i64: 8, 128>}]} {
    %c0 = arith.constant 0 : index
    %c0_0 = arith.constant 0 : index
    %0 = vector.load %arg1[%c0, %c0_0] : memref<8x32xf32, #tpu.memory_space<vmem>>, vector<8x32xf32>
    %c0_1 = arith.constant 0 : index
    %c0_2 = arith.constant 0 : index
    %1 = vector.load %arg2[%c0_1, %c0_2] : memref<32x384xbf16, #tpu.memory_space<vmem>>, vector<32x384xbf16>
    %2 = arith.extf %1 : vector<32x384xbf16> to vector<32x384xf32>
    %cst = arith.constant dense<0.000000e+00> : vector<8x384xf32>
    %3 = tpu.matmul %0, %2, %cst {dimension_numbers = #tpu.dot_dimension_numbers<[1], [0], [0], [1], [0, 0, 1, 1], [], []>} : vector<8x32xf32>, vector<32x384xf32>, vector<8x384xf32> -> vector<8x384xf32>
    %c0_3 = arith.constant 0 : index
    %c0_4 = arith.constant 0 : index
    %4 = vector.load %arg3[%c0_3, %c0_4] : memref<1x384xf32, #tpu.memory_space<vmem>>, vector<1x384xf32>
    %5 = vector.broadcast %4 : vector<1x384xf32> to vector<8x384xf32>
    %6 = arith.addf %3, %5 : vector<8x384xf32>
    %7 = vector.extract_strided_slice %6 {offsets = [0, 0], sizes = [8, 256], strides = [1, 1]} : vector<8x384xf32> to vector<8x256xf32>
    %cst_5 = arith.constant 0.00999999977 : f32
    %8 = vector.broadcast %cst_5 : f32 to vector<8x256xf32>
    %9 = arith.mulf %8, %7 : vector<8x256xf32>
    %10 = arith.maximumf %7, %9 : vector<8x256xf32>
    %c0_6 = arith.constant 0 : index
    %c0_7 = arith.constant 0 : index
    %11 = vector.load %arg4[%c0_6, %c0_7] : memref<256x256xbf16, #tpu.memory_space<vmem>>, vector<256x256xbf16>
    %12 = arith.extf %11 : vector<256x256xbf16> to vector<256x256xf32>
    %cst_8 = arith.constant dense<0.000000e+00> : vector<8x256xf32>
    %13 = tpu.matmul %10, %12, %cst_8 {dimension_numbers = #tpu.dot_dimension_numbers<[1], [0], [0], [1], [0, 0, 1, 1], [], []>} : vector<8x256xf32>, vector<256x256xf32>, vector<8x256xf32> -> vector<8x256xf32>
    %c0_9 = arith.constant 0 : index
    %c0_10 = arith.constant 0 : index
    %14 = vector.load %arg5[%c0_9, %c0_10] : memref<1x256xf32, #tpu.memory_space<vmem>>, vector<1x256xf32>
    %15 = vector.broadcast %14 : vector<1x256xf32> to vector<8x256xf32>
    %16 = arith.addf %13, %15 : vector<8x256xf32>
    %cst_11 = arith.constant 0.00999999977 : f32
    %17 = vector.broadcast %cst_11 : f32 to vector<8x256xf32>
    %18 = arith.mulf %17, %16 : vector<8x256xf32>
    %19 = arith.maximumf %16, %18 : vector<8x256xf32>
    %c0_12 = arith.constant 0 : index
    %c0_13 = arith.constant 0 : index
    %20 = vector.load %arg6[%c0_12, %c0_13] : memref<256x128xbf16, #tpu.memory_space<vmem>>, vector<256x128xbf16>
    %21 = arith.extf %20 : vector<256x128xbf16> to vector<256x128xf32>
    %cst_14 = arith.constant dense<0.000000e+00> : vector<8x128xf32>
    %22 = tpu.matmul %19, %21, %cst_14 {dimension_numbers = #tpu.dot_dimension_numbers<[1], [0], [0], [1], [0, 0, 1, 1], [], []>} : vector<8x256xf32>, vector<256x128xf32>, vector<8x128xf32> -> vector<8x128xf32>
    %c0_15 = arith.constant 0 : index
    %c0_16 = arith.constant 0 : index
    %23 = vector.load %arg7[%c0_15, %c0_16] : memref<1x128xf32, #tpu.memory_space<vmem>>, vector<1x128xf32>
    %24 = vector.broadcast %23 : vector<1x128xf32> to vector<8x128xf32>
    %25 = arith.addf %22, %24 : vector<8x128xf32>
    %26 = vector.extract_strided_slice %6 {offsets = [0, 256], sizes = [8, 128], strides = [1, 1]} : vector<8x384xf32> to vector<8x128xf32>
    %27 = math.tanh %26 : vector<8x128xf32>
    %cst_17 = arith.constant 1.000000e-01 : f32
    %28 = vector.broadcast %cst_17 : f32 to vector<8x128xf32>
    %29 = arith.mulf %27, %28 : vector<8x128xf32>
    %30 = arith.addf %25, %29 : vector<8x128xf32>
    %c0_18 = arith.constant 0 : index
    %c0_19 = arith.constant 0 : index
    %31 = vector.load %arg8[%c0_18, %c0_19] : memref<8x128xf32, #tpu.memory_space<vmem>>, vector<8x128xf32>
    tpu.vector_store %arg8[%c0_18, %c0_19], %30 {strides = array<i32>} : memref<8x128xf32, #tpu.memory_space<vmem>>, vector<8x128xf32>,
    return
  }
  func.func @transform_0(%arg0: i32) -> (i32, i32) {
    %c0_i32 = arith.constant 0 : i32
    %c0_i32_0 = arith.constant 0 : i32
    return %arg0, %c0_i32 : i32, i32
  }
  func.func @transform_1(%arg0: i32) -> (i32, i32) {
    %c0_i32 = arith.constant 0 : i32
    %c0_i32_0 = arith.constant 0 : i32
    %c0_i32_1 = arith.constant 0 : i32
    return %c0_i32, %c0_i32_0 : i32, i32
  }
  func.func @transform_2(%arg0: i32) -> (i32, i32) {
    %c0_i32 = arith.constant 0 : i32
    %c0_i32_0 = arith.constant 0 : i32
    %c0_i32_1 = arith.constant 0 : i32
    return %c0_i32, %c0_i32_0 : i32, i32
  }
  func.func @transform_3(%arg0: i32) -> (i32, i32) {
    %c0_i32 = arith.constant 0 : i32
    %c0_i32_0 = arith.constant 0 : i32
    %c0_i32_1 = arith.constant 0 : i32
    return %c0_i32, %c0_i32_0 : i32, i32
  }
  func.func @transform_4(%arg0: i32) -> (i32, i32) {
    %c0_i32 = arith.constant 0 : i32
    %c0_i32_0 = arith.constant 0 : i32
    %c0_i32_1 = arith.constant 0 : i32
    return %c0_i32, %c0_i32_0 : i32, i32
  }
  func.func @transform_5(%arg0: i32) -> (i32, i32) {
    %c0_i32 = arith.constant 0 : i32
    %c0_i32_0 = arith.constant 0 : i32
    %c0_i32_1 = arith.constant 0 : i32
    return %c0_i32, %c0_i32_0 : i32, i32
  }
  func.func @transform_6(%arg0: i32) -> (i32, i32) {
    %c0_i32 = arith.constant 0 : i32
    %c0_i32_0 = arith.constant 0 : i32
    %c0_i32_1 = arith.constant 0 : i32
    return %c0_i32, %c0_i32_0 : i32, i32
  }
  func.func @transform_7(%arg0: i32) -> (i32, i32) {
    %c0_i32 = arith.constant 0 : i32
    %c0_i32_0 = arith.constant 0 : i32
    return %arg0, %c0_i32 : i32, i32
  }
}

</mosaic_0001>

<llo_original>
// kernel: tpu_custom_call.1
$region0: #{tpu_custom_call.1}
  #allocation0 [shape = 'u32[]', space=smem, size = 0x4, offset = 0x4, fixed_abs, tag = 'smem constant byte address 0x4 - core index']
  #allocation1 [shape = 'u32[144,128]{1,0:T(1,128)}', space=vmem, size = 0x12000, scoped, tag = 'internal scratch']
  %s0 = inlined_call_operand.hbm [shape: f32[8,32], index: 0, kind: input, shape index: {}]
  %s1 = inlined_call_operand.hbm [shape: bf16[32,384], index: 1, kind: input, shape index: {}]
  %s2 = inlined_call_operand.vmem [shape: f32[1,384], index: 2, kind: input, shape index: {}]
  %s3 = inlined_call_operand.hbm [shape: bf16[256,256], index: 3, kind: input, shape index: {}]
  %s4 = inlined_call_operand.vmem [shape: f32[1,256], index: 4, kind: input, shape index: {}]
  %s5 = inlined_call_operand.hbm [shape: bf16[256,128], index: 5, kind: input, shape index: {}]
  %s6 = inlined_call_operand.vmem [shape: f32[1,128], index: 6, kind: input, shape index: {}]
  %s7 = inlined_call_operand.hbm [shape: f32[8,128], index: 7, kind: output, shape index: {}]
  %s8 = sld [smem:[#allocation0]]
  $region54: #{tpu_custom_call.1} parent=0
    _
  %s10 = ssub.s32 1, %s8
  %s11 = scalar_select 0, %s10, %s8
  $region1: #{tpu_custom_call.1} parent=0
    #allocation2 [shape = 'u8[4096]{0}', space=vmem, size = 0x1000, scoped, tag = 'input window, operand 0, single buffered']
    #allocation3 [shape = 's32[1]{0}', space=sflag, size = 0x4, scoped, tag = 'scoped memory for tpu_custom_call.1']
    #allocation4 [shape = 's32[1]{0}', space=sflag, size = 0x4, scoped, tag = 'scoped memory for tpu_custom_call.1']
    #allocation5 [shape = 'u8[24576]{0}', space=vmem, size = 0x6000, scoped, tag = 'input window, operand 1, single buffered']
    #allocation6 [shape = 's32[1]{0}', space=sflag, size = 0x4, scoped, tag = 'scoped memory for tpu_custom_call.1']
    #allocation7 [shape = 'u8[131072]{0}', space=vmem, size = 0x20000, scoped, tag = 'input window, operand 3, single buffered']
    #allocation8 [shape = 'u8[65536]{0}', space=vmem, size = 0x10000, scoped, tag = 'input window, operand 5, single buffered']
    #allocation9 [shape = 's32[1]{0}', space=sflag, size = 0x4, scoped, tag = 'scoped memory for tpu_custom_call.1']
    #allocation10 [shape = 'u8[4096]{0}', space=vmem, size = 0x1000, scoped, tag = 'output window, operand 0, single buffered']
    %12 = vsyncpa [#allocation3], 0
    %13 = vsyncpa [#allocation6], 0
    %14 = vsyncpa [#allocation9], 0
    %15 = vsyncpa [#allocation4], 0
    // Predicated region
    $region2: #{tpu_custom_call.1} parent=1 // pred_check
      _
    $region3: #{tpu_custom_call.1} parent=1 // pred_check_branch
      %17 = sbr.rel (0) target = $region5
    $region4: #{tpu_custom_call.1} parent=1 // pred_region
      %s19 = ssub.s32 128, 128
      %20 = vsyncadd [#allocation3], %s19
      %s22 = sshll.u32 [#allocation2], 4
      %s23 = int_to_ptr.vmem [resolvable:$true] %s22
      %25 = dma.hbm_to_vmem [thread:$0]  %s0, 128, %s23, [#allocation3]
    $region5: #{tpu_custom_call.1} parent=1 // pred_fallthru
      _
    // Predicated region
    $region6: #{tpu_custom_call.1} parent=1 // pred_check
      _
    $region7: #{tpu_custom_call.1} parent=1 // pred_check_branch
      %27 = sbr.rel (0) target = $region9
    $region8: #{tpu_custom_call.1} parent=1 // pred_region
      %s29 = ssub.s32 768, 768
      %30 = vsyncadd [#allocation6], %s29
      %s31 = sshll.u32 [#allocation5], 4
      %s32 = int_to_ptr.vmem [resolvable:$true] %s31
      %37 = dma.hbm_to_vmem [thread:$0]  %s1, 768, %s32, [#allocation6], 192, 192, 12
    $region9: #{tpu_custom_call.1} parent=1 // pred_fallthru
      _
    // Predicated region
    $region10: #{tpu_custom_call.1} parent=1 // pred_check
      _
    $region11: #{tpu_custom_call.1} parent=1 // pred_check_branch
      %39 = sbr.rel (0) target = $region13
    $region12: #{tpu_custom_call.1} parent=1 // pred_region
      _
    $region13: #{tpu_custom_call.1} parent=1 // pred_fallthru
      _
    // Predicated region
    $region14: #{tpu_custom_call.1} parent=1 // pred_check
      _
    $region15: #{tpu_custom_call.1} parent=1 // pred_check_branch
      %41 = sbr.rel (0) target = $region17
    $region16: #{tpu_custom_call.1} parent=1 // pred_region
      %s43 = ssub.s32 4096, 4096
      %44 = vsyncadd [#allocation6], %s43
      %s45 = sshll.u32 [#allocation7], 4
      %s46 = int_to_ptr.vmem [resolvable:$true] %s45
      %51 = dma.hbm_to_vmem [thread:$0]  %s3, 4096, %s46, [#allocation6], 128, 128, 8
    $region17: #{tpu_custom_call.1} parent=1 // pred_fallthru
      _
    // Predicated region
    $region18: #{tpu_custom_call.1} parent=1 // pred_check
      _
    $region19: #{tpu_custom_call.1} parent=1 // pred_check_branch
      %53 = sbr.rel (0) target = $region21
    $region20: #{tpu_custom_call.1} parent=1 // pred_region
      _
    $region21: #{tpu_custom_call.1} parent=1 // pred_fallthru
      _
    // Predicated region
    $region22: #{tpu_custom_call.1} parent=1 // pred_check
      _
    $region23: #{tpu_custom_call.1} parent=1 // pred_check_branch
      %55 = sbr.rel (0) target = $region25
    $region24: #{tpu_custom_call.1} parent=1 // pred_region
      %s57 = ssub.s32 2048, 2048
      %58 = vsyncadd [#allocation9], %s57
      %s59 = sshll.u32 [#allocation8], 4
      %s60 = int_to_ptr.vmem [resolvable:$true] %s59
      %65 = dma.hbm_to_vmem [thread:$0]  %s5, 2048, %s60, [#allocation9], 64, 64, 4
    $region25: #{tpu_custom_call.1} parent=1 // pred_fallthru
      _
    // Predicated region
    $region26: #{tpu_custom_call.1} parent=1 // pred_check
      _
    $region27: #{tpu_custom_call.1} parent=1 // pred_check_branch
      %67 = sbr.rel (0) target = $region29
    $region28: #{tpu_custom_call.1} parent=1 // pred_region
      _
    $region29: #{tpu_custom_call.1} parent=1 // pred_fallthru
      _
    // Predicated region
    $region30: #{tpu_custom_call.1} parent=1 // pred_check
      _
    $region31: #{tpu_custom_call.1} parent=1 // pred_check_branch
      %69 = sbr.rel (0) target = $region33
    $region32: #{tpu_custom_call.1} parent=1 // pred_region
      %70 = dma.done [#allocation3], 128
    $region33: #{tpu_custom_call.1} parent=1 // pred_fallthru
      _
    // Predicated region
    $region34: #{tpu_custom_call.1} parent=1 // pred_check
      _
    $region35: #{tpu_custom_call.1} parent=1 // pred_check_branch
      %72 = sbr.rel (0) target = $region37
    $region36: #{tpu_custom_call.1} parent=1 // pred_region
      %73 = dma.done [#allocation6], 768
    $region37: #{tpu_custom_call.1} parent=1 // pred_fallthru
      _
    // Predicated region
    $region38: #{tpu_custom_call.1} parent=1 // pred_check
      _
    $region39: #{tpu_custom_call.1} parent=1 // pred_check_branch
      %75 = sbr.rel (0) target = $region41
    $region40: #{tpu_custom_call.1} parent=1 // pred_region
      %76 = dma.done [#allocation6], 4096
    $region41: #{tpu_custom_call.1} parent=1 // pred_fallthru
      _
    // Predicated region
    $region42: #{tpu_custom_call.1} parent=1 // pred_check
      _
    $region43: #{tpu_custom_call.1} parent=1 // pred_check_branch
      %78 = sbr.rel (0) target = $region45
    $region44: #{tpu_custom_call.1} parent=1 // pred_region
      %79 = dma.done [#allocation9], 2048
    $region45: #{tpu_custom_call.1} parent=1 // pred_fallthru
      _
    %v80 = vld [vmem:[#allocation2] sm:$0xff]
    %v81 = vld [vmem:[#allocation5] sm:$0xff]
    %v82 = vld [vmem:[#allocation5 + $0x8] sm:$0xf]
    %v83 = vld [vmem:[#allocation5 + $0xc] sm:$0xff]
    %v84 = vld [vmem:[#allocation5 + $0x14] sm:$0xf]
    %v85 = vld [vmem:[#allocation5 + $0x18] sm:$0xff]
    %v86 = vld [vmem:[#allocation5 + $0x20] sm:$0xf]
    %v87 = vld [vmem:[#allocation5 + $0x24] sm:$0xff]
    %v88 = vld [vmem:[#allocation5 + $0x2c] sm:$0xf]
    %v89 = vunpack.c.l.bf16 %v81
    %v90 = vunpack.c.h.bf16 %v81
    %v91 = vunpack.c.l.bf16 %v82
    %v92 = vunpack.c.l.bf16 %v83
    %v93 = vunpack.c.h.bf16 %v83
    %v94 = vunpack.c.l.bf16 %v84
    %v95 = vunpack.c.l.bf16 %v85
    %v96 = vunpack.c.h.bf16 %v85
    %v97 = vunpack.c.l.bf16 %v86
    %v98 = vunpack.c.l.bf16 %v87
    %v99 = vunpack.c.h.bf16 %v87
    %v100 = vunpack.c.l.bf16 %v88
    %v101 = vld [vmem:[%s2] sm:$0x7]
    %v103 = vlaneseq
    %v104 = vshrl.u32 %v103, 7
    %v105 = vsub.s32 0, %v104
    %v106 = vrot.slane %v101, %v105
    %v107 = vlaneseq
    %v108 = vshrl.u32 %v107, 7
    %v109 = vsub.s32 1, %v108
    %v110 = vrot.slane %v101, %v109
    %v111 = vlaneseq
    %v112 = vshrl.u32 %v111, 7
    %v113 = vsub.s32 2, %v112
    %v114 = vrot.slane %v101, %v113
    %vm118 = vcmask 261120
    %v120 = vsel %vm118, %v80, 0
    %122 = vmatprep.subr.mxu0 0.0
    %123 = vmatpush1.msra.mxu0 0.0
    %124 = vmatprep.subr.mxu0 0.0
    %125 = vmatpush1.msra.mxu0 0.0
    %126 = vmatprep.subr.mxu0 0.0
    %127 = vmatpush1.msra.mxu0 0.0
    %128 = vmatprep.subr.mxu0 0.0
    %129 = vmatpush1.msra.mxu0 0.0
    %130 = vmatprep.subr.mxu0 0.0
    %131 = vmatpush1.msra.mxu0 0.0
    %132 = vmatprep.subr.mxu0 0.0
    %133 = vmatpush1.msra.mxu0 0.0
    %134 = vmatprep.subr.mxu0 0.0
    %135 = vmatpush1.msra.mxu0 0.0
    %136 = vmatprep.subr.mxu0 0.0
    %137 = vmatpush1.msra.mxu0 0.0
    %138 = vmatprep.subr.mxu0 0.0
    %139 = vmatpush1.msra.mxu0 0.0
    %140 = vmatprep.subr.mxu0 0.0
    %141 = vmatpush1.msra.mxu0 0.0
    %142 = vmatprep.subr.mxu0 0.0
    %143 = vmatpush1.msra.mxu0 0.0
    %144 = vmatprep.subr.mxu0 0.0
    %145 = vmatpush1.msra.mxu0 0.0
    %146 = vmatprep.subr.mxu0 %v99
    %147 = vmatpush1.msra.mxu0 %v98
    %148 = vmatprep.subr.mxu0 %v96
    %149 = vmatpush1.msra.mxu0 %v95
    %150 = vmatprep.subr.mxu0 %v93
    %151 = vmatpush1.msra.mxu0 %v92
    %152 = vmatprep.subr.mxu0 %v90
    %153 = vmatpush1.msra.mxu0 %v89
    %154 = vmatprep.subr.mxu0 0.0
    %155 = vmatpush2.msra.mxu0 0.0
    %156 = vmatprep.subr.mxu0 0.0
    %157 = vmatpush2.msra.mxu0 0.0
    %158 = vmatprep.subr.mxu0 0.0
    %159 = vmatpush2.msra.mxu0 0.0
    %160 = vmatprep.subr.mxu0 0.0
    %161 = vmatpush2.msra.mxu0 0.0
    %162 = vmatprep.subr.mxu0 0.0
    %163 = vmatpush2.msra.mxu0 0.0
    %164 = vmatprep.subr.mxu0 0.0
    %165 = vmatpush2.msra.mxu0 0.0
    %166 = vmatprep.subr.mxu0 0.0
    %167 = vmatpush2.msra.mxu0 0.0
    %168 = vmatprep.subr.mxu0 0.0
    %169 = vmatpush2.msra.mxu0 0.0
    %170 = vmatprep.subr.mxu0 0.0
    %171 = vmatpush2.msra.mxu0 0.0
    %172 = vmatprep.subr.mxu0 0.0
    %173 = vmatpush2.msra.mxu0 0.0
    %174 = vmatprep.subr.mxu0 0.0
    %175 = vmatpush2.msra.mxu0 0.0
    %176 = vmatprep.subr.mxu0 0.0
    %177 = vmatpush2.msra.mxu0 0.0
    %178 = vmatprep.subr.mxu0 0.0
    %179 = vmatpush2.msra.mxu0 0.0
    %180 = vmatprep.subr.mxu0 0.0
    %181 = vmatpush2.msra.mxu0 0.0
    %182 = vmatprep.subr.mxu0 0.0
    %183 = vmatpush2.msra.mxu0 0.0
    %184 = vmatprep.subr.mxu0 0.0
    %185 = vmatpush2.msra.mxu0 0.0
    %186 = vmatprep.mubr.f32.mxu0 0.0
    %187 = vmatmul.mubr.f32.gmra.mxu0 %v120
    %v188 = vpop.f32.mrf.mxu0
    %v189 = vadd.f32 %v106, %v188
    %v190 = vpop.f32.mrf.mxu0
    %v191 = vadd.f32 %v110, %v190
    %192 = vdwg.mxu0
    %193 = vmatprep.subr.mxu0 0.0
    %194 = vmatpush1.msra.mxu0 0.0
    %195 = vmatprep.subr.mxu0 0.0
    %196 = vmatpush1.msra.mxu0 0.0
    %197 = vmatprep.subr.mxu0 0.0
    %198 = vmatpush1.msra.mxu0 0.0
    %199 = vmatprep.subr.mxu0 0.0
    %200 = vmatpush1.msra.mxu0 0.0
    %201 = vmatprep.subr.mxu0 0.0
    %202 = vmatpush1.msra.mxu0 0.0
    %203 = vmatprep.subr.mxu0 0.0
    %204 = vmatpush1.msra.mxu0 0.0
    %205 = vmatprep.subr.mxu0 0.0
    %206 = vmatpush1.msra.mxu0 0.0
    %207 = vmatprep.subr.mxu0 0.0
    %208 = vmatpush1.msra.mxu0 0.0
    %209 = vmatprep.subr.mxu0 0.0
    %210 = vmatpush1.msra.mxu0 0.0
    %211 = vmatprep.subr.mxu0 0.0
    %212 = vmatpush1.msra.mxu0 0.0
    %213 = vmatprep.subr.mxu0 0.0
    %214 = vmatpush1.msra.mxu0 0.0
    %215 = vmatprep.subr.mxu0 0.0
    %216 = vmatpush1.msra.mxu0 0.0
    %217 = vmatprep.subr.mxu0 0.0
    %218 = vmatpush1.msra.mxu0 %v100
    %219 = vmatprep.subr.mxu0 0.0
    %220 = vmatpush1.msra.mxu0 %v97
    %221 = vmatprep.subr.mxu0 0.0
    %222 = vmatpush1.msra.mxu0 %v94
    %223 = vmatprep.subr.mxu0 0.0
    %224 = vmatpush1.msra.mxu0 %v91
    %225 = vmatprep.subr.mxu0 0.0
    %226 = vmatpush2.msra.mxu0 0.0
    %227 = vmatprep.subr.mxu0 0.0
    %228 = vmatpush2.msra.mxu0 0.0
    %229 = vmatprep.subr.mxu0 0.0
    %230 = vmatpush2.msra.mxu0 0.0
    %231 = vmatprep.subr.mxu0 0.0
    %232 = vmatpush2.msra.mxu0 0.0
    %233 = vmatprep.subr.mxu0 0.0
    %234 = vmatpush2.msra.mxu0 0.0
    %235 = vmatprep.subr.mxu0 0.0
    %236 = vmatpush2.msra.mxu0 0.0
    %237 = vmatprep.subr.mxu0 0.0
    %238 = vmatpush2.msra.mxu0 0.0
    %239 = vmatprep.subr.mxu0 0.0
    %240 = vmatpush2.msra.mxu0 0.0
    %241 = vmatprep.subr.mxu0 0.0
    %242 = vmatpush2.msra.mxu0 0.0
    %243 = vmatprep.subr.mxu0 0.0
    %244 = vmatpush2.msra.mxu0 0.0
    %245 = vmatprep.subr.mxu0 0.0
    %246 = vmatpush2.msra.mxu0 0.0
    %247 = vmatprep.subr.mxu0 0.0
    %248 = vmatpush2.msra.mxu0 0.0
    %249 = vmatprep.subr.mxu0 0.0
    %250 = vmatpush2.msra.mxu0 0.0
    %251 = vmatprep.subr.mxu0 0.0
    %252 = vmatpush2.msra.mxu0 0.0
    %253 = vmatprep.subr.mxu0 0.0
    %254 = vmatpush2.msra.mxu0 0.0
    %255 = vmatprep.subr.mxu0 0.0
    %256 = vmatpush2.msra.mxu0 0.0
    %257 = vmatprep.mubr.f32.mxu0 0.0
    %258 = vmatmul.mubr.f32.gmra.mxu0 %v120
    %v259 = vpop.f32.mrf.mxu0
    %v260 = vadd.f32 %v114, %v259
    %v261 = vpop.f32.mrf.mxu0
    %262 = vdwg.mxu0
    %v263 = vmul.f32 %v189, 0.01
    %v264 = vmul.f32 %v191, 0.01
    %v265 = vmax.f32 %v189, %v263
    %v266 = vmax.f32 %v191, %v264
    %v267 = vld [vmem:[#allocation7] sm:$0xff]
    %v268 = vld [vmem:[#allocation7 + $0x8] sm:$0xff]
    %v269 = vld [vmem:[#allocation7 + $0x10] sm:$0xff]
    %v270 = vld [vmem:[#allocation7 + $0x18] sm:$0xff]
    %v271 = vld [vmem:[#allocation7 + $0x20] sm:$0xff]
    %v272 = vld [vmem:[#allocation7 + $0x28] sm:$0xff]
    %v273 = vld [vmem:[#allocation7 + $0x30] sm:$0xff]
    %v274 = vld [vmem:[#allocation7 + $0x38] sm:$0xff]
    %v275 = vld [vmem:[#allocation7 + $0x40] sm:$0xff]
    %v276 = vld [vmem:[#allocation7 + $0x48] sm:$0xff]
    %v277 = vld [vmem:[#allocation7 + $0x50] sm:$0xff]
    %v278 = vld [vmem:[#allocation7 + $0x58] sm:$0xff]
    %v279 = vld [vmem:[#allocation7 + $0x60] sm:$0xff]
    %v280 = vld [vmem:[#allocation7 + $0x68] sm:$0xff]
    %v281 = vld [vmem:[#allocation7 + $0x70] sm:$0xff]
    %v282 = vld [vmem:[#allocation7 + $0x78] sm:$0xff]
    %v283 = vld [vmem:[#allocation7 + $0x80] sm:$0xff]
    %v284 = vld [vmem:[#allocation7 + $0x88] sm:$0xff]
    %v285 = vld [vmem:[#allocation7 + $0x90] sm:$0xff]
    %v286 = vld [vmem:[#allocation7 + $0x98] sm:$0xff]
    %v287 = vld [vmem:[#allocation7 + $0xa0] sm:$0xff]
    %v288 = vld [vmem:[#allocation7 + $0xa8] sm:$0xff]
    %v289 = vld [vmem:[#allocation7 + $0xb0] sm:$0xff]
    %v290 = vld [vmem:[#allocation7 + $0xb8] sm:$0xff]
    %v291 = vld [vmem:[#allocation7 + $0xc0] sm:$0xff]
    %v292 = vld [vmem:[#allocation7 + $0xc8] sm:$0xff]
    %v293 = vld [vmem:[#allocation7 + $0xd0] sm:$0xff]
    %v294 = vld [vmem:[#allocation7 + $0xd8] sm:$0xff]
    %v295 = vld [vmem:[#allocation7 + $0xe0] sm:$0xff]
    %v296 = vld [vmem:[#allocation7 + $0xe8] sm:$0xff]
    %v297 = vld [vmem:[#allocation7 + $0xf0] sm:$0xff]
    %v298 = vld [vmem:[#allocation7 + $0xf8] sm:$0xff]
    %v299 = vunpack.c.l.bf16 %v267
    %v300 = vunpack.c.h.bf16 %v267
    %v301 = vunpack.c.l.bf16 %v268
    %v302 = vunpack.c.h.bf16 %v268
    %v303 = vunpack.c.l.bf16 %v269
    %v304 = vunpack.c.h.bf16 %v269
    %v305 = vunpack.c.l.bf16 %v270
    %v306 = vunpack.c.h.bf16 %v270
    %v307 = vunpack.c.l.bf16 %v271
    %v308 = vunpack.c.h.bf16 %v271
    %v309 = vunpack.c.l.bf16 %v272
    %v310 = vunpack.c.h.bf16 %v272
    %v311 = vunpack.c.l.bf16 %v273
    %v312 = vunpack.c.h.bf16 %v273
    %v313 = vunpack.c.l.bf16 %v274
    %v314 = vunpack.c.h.bf16 %v274
    %v315 = vunpack.c.l.bf16 %v275
    %v316 = vunpack.c.h.bf16 %v275
    %v317 = vunpack.c.l.bf16 %v276
    %v318 = vunpack.c.h.bf16 %v276
    %v319 = vunpack.c.l.bf16 %v277
    %v320 = vunpack.c.h.bf16 %v277
    %v321 = vunpack.c.l.bf16 %v278
    %v322 = vunpack.c.h.bf16 %v278
    %v323 = vunpack.c.l.bf16 %v279
    %v324 = vunpack.c.h.bf16 %v279
    %v325 = vunpack.c.l.bf16 %v280
    %v326 = vunpack.c.h.bf16 %v280
    %v327 = vunpack.c.l.bf16 %v281
    %v328 = vunpack.c.h.bf16 %v281
    %v329 = vunpack.c.l.bf16 %v282
    %v330 = vunpack.c.h.bf16 %v282
    %v331 = vunpack.c.l.bf16 %v283
    %v332 = vunpack.c.h.bf16 %v283
    %v333 = vunpack.c.l.bf16 %v284
    %v334 = vunpack.c.h.bf16 %v284
    %v335 = vunpack.c.l.bf16 %v285
    %v336 = vunpack.c.h.bf16 %v285
    %v337 = vunpack.c.l.bf16 %v286
    %v338 = vunpack.c.h.bf16 %v286
    %v339 = vunpack.c.l.bf16 %v287
    %v340 = vunpack.c.h.bf16 %v287
    %v341 = vunpack.c.l.bf16 %v288
    %v342 = vunpack.c.h.bf16 %v288
    %v343 = vunpack.c.l.bf16 %v289
    %v344 = vunpack.c.h.bf16 %v289
    %v345 = vunpack.c.l.bf16 %v290
    %v346 = vunpack.c.h.bf16 %v290
    %v347 = vunpack.c.l.bf16 %v291
    %v348 = vunpack.c.h.bf16 %v291
    %v349 = vunpack.c.l.bf16 %v292
    %v350 = vunpack.c.h.bf16 %v292
    %v351 = vunpack.c.l.bf16 %v293
    %v352 = vunpack.c.h.bf16 %v293
    %v353 = vunpack.c.l.bf16 %v294
    %v354 = vunpack.c.h.bf16 %v294
    %v355 = vunpack.c.l.bf16 %v295
    %v356 = vunpack.c.h.bf16 %v295
    %v357 = vunpack.c.l.bf16 %v296
    %v358 = vunpack.c.h.bf16 %v296
    %v359 = vunpack.c.l.bf16 %v297
    %v360 = vunpack.c.h.bf16 %v297
    %v361 = vunpack.c.l.bf16 %v298
    %v362 = vunpack.c.h.bf16 %v298
    %v363 = vld [vmem:[%s4] sm:$0x3]
    %v365 = vlaneseq
    %v366 = vshrl.u32 %v365, 7
    %v367 = vsub.s32 0, %v366
    %v368 = vrot.slane %v363, %v367
    %v369 = vlaneseq
    %v370 = vshrl.u32 %v369, 7
    %v371 = vsub.s32 1, %v370
    %v372 = vrot.slane %v363, %v371
    %375 = vmatprep.subr.mxu0 %v330
    %376 = vmatpush1.msra.mxu0 %v329
    %377 = vmatprep.subr.mxu0 %v328
    %378 = vmatpush1.msra.mxu0 %v327
    %379 = vmatprep.subr.mxu0 %v326
    %380 = vmatpush1.msra.mxu0 %v325
    %381 = vmatprep.subr.mxu0 %v324
    %382 = vmatpush1.msra.mxu0 %v323
    %383 = vmatprep.subr.mxu0 %v322
    %384 = vmatpush1.msra.mxu0 %v321
    %385 = vmatprep.subr.mxu0 %v320
    %386 = vmatpush1.msra.mxu0 %v319
    %387 = vmatprep.subr.mxu0 %v318
    %388 = vmatpush1.msra.mxu0 %v317
    %389 = vmatprep.subr.mxu0 %v316
    %390 = vmatpush1.msra.mxu0 %v315
    %391 = vmatprep.subr.mxu0 %v314
    %392 = vmatpush1.msra.mxu0 %v313
    %393 = vmatprep.subr.mxu0 %v312
    %394 = vmatpush1.msra.mxu0 %v311
    %395 = vmatprep.subr.mxu0 %v310
    %396 = vmatpush1.msra.mxu0 %v309
    %397 = vmatprep.subr.mxu0 %v308
    %398 = vmatpush1.msra.mxu0 %v307
    %399 = vmatprep.subr.mxu0 %v306
    %400 = vmatpush1.msra.mxu0 %v305
    %401 = vmatprep.subr.mxu0 %v304
    %402 = vmatpush1.msra.mxu0 %v303
    %403 = vmatprep.subr.mxu0 %v302
    %404 = vmatpush1.msra.mxu0 %v301
    %405 = vmatprep.subr.mxu0 %v300
    %406 = vmatpush1.msra.mxu0 %v299
    %407 = vmatprep.subr.mxu0 %v362
    %408 = vmatpush2.msra.mxu0 %v361
    %409 = vmatprep.subr.mxu0 %v360
    %410 = vmatpush2.msra.mxu0 %v359
    %411 = vmatprep.subr.mxu0 %v358
    %412 = vmatpush2.msra.mxu0 %v357
    %413 = vmatprep.subr.mxu0 %v356
    %414 = vmatpush2.msra.mxu0 %v355
    %415 = vmatprep.subr.mxu0 %v354
    %416 = vmatpush2.msra.mxu0 %v353
    %417 = vmatprep.subr.mxu0 %v352
    %418 = vmatpush2.msra.mxu0 %v351
    %419 = vmatprep.subr.mxu0 %v350
    %420 = vmatpush2.msra.mxu0 %v349
    %421 = vmatprep.subr.mxu0 %v348
    %422 = vmatpush2.msra.mxu0 %v347
    %423 = vmatprep.subr.mxu0 %v346
    %424 = vmatpush2.msra.mxu0 %v345
    %425 = vmatprep.subr.mxu0 %v344
    %426 = vmatpush2.msra.mxu0 %v343
    %427 = vmatprep.subr.mxu0 %v342
    %428 = vmatpush2.msra.mxu0 %v341
    %429 = vmatprep.subr.mxu0 %v340
    %430 = vmatpush2.msra.mxu0 %v339
    %431 = vmatprep.subr.mxu0 %v338
    %432 = vmatpush2.msra.mxu0 %v337
    %433 = vmatprep.subr.mxu0 %v336
    %434 = vmatpush2.msra.mxu0 %v335
    %435 = vmatprep.subr.mxu0 %v334
    %436 = vmatpush2.msra.mxu0 %v333
    %437 = vmatprep.subr.mxu0 %v332
    %438 = vmatpush2.msra.mxu0 %v331
    %439 = vmatprep.mubr.f32.mxu0 %v266
    %440 = vmatmul.mubr.f32.gmra.mxu0 %v265
    %v441 = vpop.f32.mrf.mxu0
    %v442 = vadd.f32 %v368, %v441
    %v443 = vpop.f32.mrf.mxu0
    %v444 = vadd.f32 %v372, %v443
    %445 = vdwg.mxu0
    %v446 = vmul.f32 %v442, 0.01
    %v447 = vmul.f32 %v444, 0.01
    %v448 = vmax.f32 %v442, %v446
    %v449 = vmax.f32 %v444, %v447
    %v450 = vld [vmem:[#allocation8] sm:$0xf]
    %v451 = vld [vmem:[#allocation8 + $0x4] sm:$0xf]
    %v452 = vld [vmem:[#allocation8 + $0x8] sm:$0xf]
    %v453 = vld [vmem:[#allocation8 + $0xc] sm:$0xf]
    %v454 = vld [vmem:[#allocation8 + $0x10] sm:$0xf]
    %v455 = vld [vmem:[#allocation8 + $0x14] sm:$0xf]
    %v456 = vld [vmem:[#allocation8 + $0x18] sm:$0xf]
    %v457 = vld [vmem:[#allocation8 + $0x1c] sm:$0xf]
    %v458 = vld [vmem:[#allocation8 + $0x20] sm:$0xf]
    %v459 = vld [vmem:[#allocation8 + $0x24] sm:$0xf]
    %v460 = vld [vmem:[#allocation8 + $0x28] sm:$0xf]
    %v461 = vld [vmem:[#allocation8 + $0x2c] sm:$0xf]
    %v462 = vld [vmem:[#allocation8 + $0x30] sm:$0xf]
    %v463 = vld [vmem:[#allocation8 + $0x34] sm:$0xf]
    %v464 = vld [vmem:[#allocation8 + $0x38] sm:$0xf]
    %v465 = vld [vmem:[#allocation8 + $0x3c] sm:$0xf]
    %v466 = vld [vmem:[#allocation8 + $0x40] sm:$0xf]
    %v467 = vld [vmem:[#allocation8 + $0x44] sm:$0xf]
    %v468 = vld [vmem:[#allocation8 + $0x48] sm:$0xf]
    %v469 = vld [vmem:[#allocation8 + $0x4c] sm:$0xf]
    %v470 = vld [vmem:[#allocation8 + $0x50] sm:$0xf]
    %v471 = vld [vmem:[#allocation8 + $0x54] sm:$0xf]
    %v472 = vld [vmem:[#allocation8 + $0x58] sm:$0xf]
    %v473 = vld [vmem:[#allocation8 + $0x5c] sm:$0xf]
    %v474 = vld [vmem:[#allocation8 + $0x60] sm:$0xf]
    %v475 = vld [vmem:[#allocation8 + $0x64] sm:$0xf]
    %v476 = vld [vmem:[#allocation8 + $0x68] sm:$0xf]
    %v477 = vld [vmem:[#allocation8 + $0x6c] sm:$0xf]
    %v478 = vld [vmem:[#allocation8 + $0x70] sm:$0xf]
    %v479 = vld [vmem:[#allocation8 + $0x74] sm:$0xf]
    %v480 = vld [vmem:[#allocation8 + $0x78] sm:$0xf]
    %v481 = vld [vmem:[#allocation8 + $0x7c] sm:$0xf]
    %v482 = vunpack.c.l.bf16 %v450
    %v483 = vunpack.c.l.bf16 %v451
    %v484 = vunpack.c.l.bf16 %v452
    %v485 = vunpack.c.l.bf16 %v453
    %v486 = vunpack.c.l.bf16 %v454
    %v487 = vunpack.c.l.bf16 %v455
    %v488 = vunpack.c.l.bf16 %v456
    %v489 = vunpack.c.l.bf16 %v457
    %v490 = vunpack.c.l.bf16 %v458
    %v491 = vunpack.c.l.bf16 %v459
    %v492 = vunpack.c.l.bf16 %v460
    %v493 = vunpack.c.l.bf16 %v461
    %v494 = vunpack.c.l.bf16 %v462
    %v495 = vunpack.c.l.bf16 %v463
    %v496 = vunpack.c.l.bf16 %v464
    %v497 = vunpack.c.l.bf16 %v465
    %v498 = vunpack.c.l.bf16 %v466
    %v499 = vunpack.c.l.bf16 %v467
    %v500 = vunpack.c.l.bf16 %v468
    %v501 = vunpack.c.l.bf16 %v469
    %v502 = vunpack.c.l.bf16 %v470
    %v503 = vunpack.c.l.bf16 %v471
    %v504 = vunpack.c.l.bf16 %v472
    %v505 = vunpack.c.l.bf16 %v473
    %v506 = vunpack.c.l.bf16 %v474
    %v507 = vunpack.c.l.bf16 %v475
    %v508 = vunpack.c.l.bf16 %v476
    %v509 = vunpack.c.l.bf16 %v477
    %v510 = vunpack.c.l.bf16 %v478
    %v511 = vunpack.c.l.bf16 %v479
    %v512 = vunpack.c.l.bf16 %v480
    %v513 = vunpack.c.l.bf16 %v481
    %v514 = vld [vmem:[%s6] sm:$0x1]
    %v516 = vlaneseq
    %v517 = vshrl.u32 %v516, 7
    %v518 = vsub.s32 0, %v517
    %v519 = vrot.slane %v514, %v518
    %521 = vmatprep.subr.mxu0 0.0
    %522 = vmatpush1.msra.mxu0 %v497
    %523 = vmatprep.subr.mxu0 0.0
    %524 = vmatpush1.msra.mxu0 %v496
    %525 = vmatprep.subr.mxu0 0.0
    %526 = vmatpush1.msra.mxu0 %v495
    %527 = vmatprep.subr.mxu0 0.0
    %528 = vmatpush1.msra.mxu0 %v494
    %529 = vmatprep.subr.mxu0 0.0
    %530 = vmatpush1.msra.mxu0 %v493
    %531 = vmatprep.subr.mxu0 0.0
    %532 = vmatpush1.msra.mxu0 %v492
    %533 = vmatprep.subr.mxu0 0.0
    %534 = vmatpush1.msra.mxu0 %v491
    %535 = vmatprep.subr.mxu0 0.0
    %536 = vmatpush1.msra.mxu0 %v490
    %537 = vmatprep.subr.mxu0 0.0
    %538 = vmatpush1.msra.mxu0 %v489
    %539 = vmatprep.subr.mxu0 0.0
    %540 = vmatpush1.msra.mxu0 %v488
    %541 = vmatprep.subr.mxu0 0.0
    %542 = vmatpush1.msra.mxu0 %v487
    %543 = vmatprep.subr.mxu0 0.0
    %544 = vmatpush1.msra.mxu0 %v486
    %545 = vmatprep.subr.mxu0 0.0
    %546 = vmatpush1.msra.mxu0 %v485
    %547 = vmatprep.subr.mxu0 0.0
    %548 = vmatpush1.msra.mxu0 %v484
    %549 = vmatprep.subr.mxu0 0.0
    %550 = vmatpush1.msra.mxu0 %v483
    %551 = vmatprep.subr.mxu0 0.0
    %552 = vmatpush1.msra.mxu0 %v482
    %553 = vmatprep.subr.mxu0 0.0
    %554 = vmatpush2.msra.mxu0 %v513
    %555 = vmatprep.subr.mxu0 0.0
    %556 = vmatpush2.msra.mxu0 %v512
    %557 = vmatprep.subr.mxu0 0.0
    %558 = vmatpush2.msra.mxu0 %v511
    %559 = vmatprep.subr.mxu0 0.0
    %560 = vmatpush2.msra.mxu0 %v510
    %561 = vmatprep.subr.mxu0 0.0
    %562 = vmatpush2.msra.mxu0 %v509
    %563 = vmatprep.subr.mxu0 0.0
    %564 = vmatpush2.msra.mxu0 %v508
    %565 = vmatprep.subr.mxu0 0.0
    %566 = vmatpush2.msra.mxu0 %v507
    %567 = vmatprep.subr.mxu0 0.0
    %568 = vmatpush2.msra.mxu0 %v506
    %569 = vmatprep.subr.mxu0 0.0
    %570 = vmatpush2.msra.mxu0 %v505
    %571 = vmatprep.subr.mxu0 0.0
    %572 = vmatpush2.msra.mxu0 %v504
    %573 = vmatprep.subr.mxu0 0.0
    %574 = vmatpush2.msra.mxu0 %v503
    %575 = vmatprep.subr.mxu0 0.0
    %576 = vmatpush2.msra.mxu0 %v502
    %577 = vmatprep.subr.mxu0 0.0
    %578 = vmatpush2.msra.mxu0 %v501
    %579 = vmatprep.subr.mxu0 0.0
    %580 = vmatpush2.msra.mxu0 %v500
    %581 = vmatprep.subr.mxu0 0.0
    %582 = vmatpush2.msra.mxu0 %v499
    %583 = vmatprep.subr.mxu0 0.0
    %584 = vmatpush2.msra.mxu0 %v498
    %585 = vmatprep.mubr.f32.mxu0 %v449
    %586 = vmatmul.mubr.f32.gmra.mxu0 %v448
    %v587 = vpop.f32.mrf.mxu0
    %v588 = vadd.f32 %v519, %v587
    %v589 = vpop.f32.mrf.mxu0
    %590 = vdwg.mxu0
    %v591 = vtanh.pop %v260
    %v592 = vmul.f32 %v591, 0.1
    %v593 = vadd.f32 %v588, %v592
    %594 = vst [vmem:[#allocation10] sm:$0xff] %v593
    // Predicated region
    $region46: #{tpu_custom_call.1} parent=1 // pred_check
      _
    $region47: #{tpu_custom_call.1} parent=1 // pred_check_branch
      %596 = sbr.rel (0) target = $region49
    $region48: #{tpu_custom_call.1} parent=1 // pred_region
      %s598 = ssub.s32 128, 128
      %599 = vsyncadd [#allocation4], %s598
      %s601 = sshll.u32 [#allocation10], 4
      %s602 = int_to_ptr.vmem [resolvable:$true] %s601
      %604 = dma.vmem_to_hbm [thread:$0]  %s602, 128, %s7, [#allocation4]
    $region49: #{tpu_custom_call.1} parent=1 // pred_fallthru
      _
    // Predicated region
    $region50: #{tpu_custom_call.1} parent=1 // pred_check
      _
    $region51: #{tpu_custom_call.1} parent=1 // pred_check_branch
      %606 = sbr.rel (0) target = $region53
    $region52: #{tpu_custom_call.1} parent=1 // pred_region
      %607 = dma.done [#allocation4], 128
    $region53: #{tpu_custom_call.1} parent=1 // pred_fallthru
      _
    %608 = vsyncpa [#allocation3], 1
    %609 = vsyncpa [#allocation6], 1
    %610 = vsyncpa [#allocation9], 1
    %611 = vsyncpa [#allocation4], 1

</llo_original>
